<compile_context>
chip_gen: v6e
topology: v6e:2x2x1
jax: 0.10.0
libtpu: 0.0.40
codegen_flags: <defaults>
</compile_context>

<pallas_src>
import jax
import jax.numpy as jnp
from jax.experimental import pallas as pl
from jax.experimental.pallas import tpu as pltpu


def _round_up(a, m):
    return ((a + m - 1) // m) * m


def _proj_kernel(x_ref, w_ref, b_ref, o_ref):
    # x_ref: (TM, Cin)  w_ref: (Cin, TN)  b_ref: (1, TN)  o_ref: (TM, TN)
    acc = jnp.dot(x_ref[...], w_ref[...], preferred_element_type=jnp.float32)
    o_ref[...] = (acc + b_ref[...]).astype(o_ref.dtype)


def _pick_tiles(m, cout_pad):
    """Lane-dense column tile + big row tile, grid kept >=2 steps for v7x megacore."""
    tn = next(t for t in (512, 384, 256, 128) if t <= cout_pad and cout_pad % t == 0)
    # HBM-bound kernel: measured tiled-copy roofline ~63% @256-wide, ~85% @512, ~86% @1024.
    if m >= 8 * 1024:
        tm = 1024
    elif m >= 1024:
        tm = 512
    else:
        tm = min(512, _round_up(m, 8))
    # v7x has 2 TensorCores per chip: a (1,1) grid would leave one idle.
    while pl.cdiv(m, tm) * (cout_pad // tn) < 2 and tm > 8:
        tm = max(8, tm // 2)
    return tm, tn


def _vmem_limit_bytes(tm, k, tn, itemsize=4, n_bufs=2):
    """Scoped-VMEM request from actual (8,128)-padded block bytes, double-buffered."""
    def blk(rows, cols):
        return _round_up(rows, 8) * _round_up(cols, 128) * itemsize
    per_step = blk(tm, k) + blk(k, tn) + blk(1, tn) + blk(tm, tn)
    needed = n_bufs * per_step
    # 2x headroom for Mosaic-internal scratch, capped at v7x's 64 MiB physical VMEM.
    return int(min(64 * 1024 * 1024, max(16 * 1024 * 1024, 2 * needed)))


def single_embedding_forward(x_nchw, w, b, *, matmul_dtype=jnp.float32):
    """SingleEmbedding.forward (proj 1x1 conv -> AvgPool2d(r, r)).

    x_nchw : (N, Cin, H, W) float32, H == W == img_size
    w      : (Cout, Cin, 1, 1) PyTorch 1x1-conv weight
    b      : (Cout,) conv bias
    returns: (N, Cout, H//r, W//r) with r = 256 // (16 * (256 // img_size)) = img_size // 16
    """
    N, Cin, H, W = x_nchw.shape
    Cout = w.shape[0]
    assert H == W, "SingleEmbedding assumes square inputs"
    # Mirror the PyTorch module's implicit assumptions (avoids div-by-zero / surprising r).
    assert 16 <= H <= 256 and 256 % H == 0 and H % 16 == 0, (
        "img_size must be one of 16/32/64/128/256 for the module's r derivation")
    R = 256 // H
    r = 256 // (16 * R)
    assert r >= 1 and H % r == 0
    Hp, Wp = H // r, W // r

    # ---- wrapper-side layout: window SUM first (r^2-smaller tensor), then one transpose ----
    x = x_nchw.reshape(N, Cin, Hp, r, Wp, r).sum(axis=(3, 5))   # (N, Cin, Hp, Wp)
    x = jnp.transpose(x, (0, 2, 3, 1))                          # (N, Hp, Wp, Cin)
    x_win = x.reshape(N * Hp * Wp, Cin).astype(matmul_dtype)    # (M, Cin)

    # 1/r^2 folded into the weight; Cout padded to a lane-dense multiple of 128.
    cout_pad = _round_up(Cout, 128)
    w2 = jnp.transpose(w.reshape(Cout, Cin), (1, 0)) * (1.0 / float(r * r))   # (Cin, Cout)
    if cout_pad != Cout:
        w2 = jnp.pad(w2, ((0, 0), (0, cout_pad - Cout)))
        b2 = jnp.pad(b, (0, cout_pad - Cout)).reshape(1, cout_pad)
    else:
        b2 = b.reshape(1, cout_pad)
    w2 = w2.astype(matmul_dtype)
    b2 = b2.astype(jnp.float32)

    M, K = x_win.shape
    TM, TN = _pick_tiles(M, cout_pad)
    grid = (pl.cdiv(M, TM), cout_pad // TN)          # no jnp.pad copy of the activation

    out = pl.pallas_call(
        _proj_kernel,
        out_shape=jax.ShapeDtypeStruct((M, cout_pad), jnp.float32),
        grid=grid,
        in_specs=[
            pl.BlockSpec((TM, K), lambda i, j: (i, 0)),   # pooled activation row tile
            pl.BlockSpec((K, TN), lambda i, j: (0, j)),   # plain (Cin, Cout) weight column tile
            pl.BlockSpec((1, TN), lambda i, j: (0, j)),   # bias column tile
        ],
        out_specs=pl.BlockSpec((TM, TN), lambda i, j: (i, j)),
        compiler_params=pltpu.CompilerParams(
            dimension_semantics=("parallel", "parallel"),
            vmem_limit_bytes=_vmem_limit_bytes(TM, K, TN),
        ),
    )(x_win, w2, b2)

    out = out[:, :Cout].reshape(N, Hp, Wp, Cout)
    # Downstream (PyTorch contract) consumes NCHW; drop this transpose if NHWC is acceptable.
    return jnp.transpose(out, (0, 3, 1, 2))


def single_embedding_reference(x, w, b):
    """Pure-JAX NCHW reference matching the PyTorch forward exactly (conv then pool)."""
    N, Cin, H, W = x.shape
    Cout = w.shape[0]
    R = 256 // H
    r = 256 // (16 * R)
    y = jax.lax.conv_general_dilated(
        x, w, window_strides=(1, 1), padding="VALID",
        dimension_numbers=("NCHW", "OIHW", "NCHW"))
    y = y + b[None, :, None, None]
    Hp, Wp = H // r, W // r
    y = y[:, :, :Hp * r, :Wp * r].reshape(N, Cout, Hp, r, Wp, r).mean(axis=(3, 5))
    return y


if __name__ == "__main__":
    key = jax.random.PRNGKey(0)
    kx, kw, kb = jax.random.split(key, 3)

    # in_ch=4, img_size=32 -> r = 2 (real pooling), embed_dim = module default 384.
    N, in_ch, img_size, embed_dim = 2, 4, 32, 384
    x = jax.random.normal(kx, (N, in_ch, img_size, img_size), jnp.float32)
    w = jax.random.normal(kw, (embed_dim, in_ch, 1, 1), jnp.float32) / jnp.sqrt(float(in_ch))
    b = 0.1 * jax.random.normal(kb, (embed_dim,), jnp.float32)

    out = jax.block_until_ready(single_embedding_forward(x, w, b))
    ref = jax.block_until_ready(single_embedding_reference(x, w, b))

    assert out.shape == (N, embed_dim, 16, 16), out.shape
    max_err = float(jnp.max(jnp.abs(out - ref)))
    assert jnp.allclose(out, ref, rtol=1e-4, atol=1e-4), max_err

    print("KERNEL_OK")
</pallas_src>

<mosaic_0001>
module attributes {stable_mosaic.version = 11 : i64} {
  func.func @_proj_kernel(%arg0: i32, %arg1: i32, %arg2: memref<256x4xf32, #tpu.memory_space<vmem>>, %arg3: memref<4x384xf32, #tpu.memory_space<vmem>>, %arg4: memref<1x384xf32, #tpu.memory_space<vmem>>, %arg5: memref<256x384xf32, #tpu.memory_space<vmem>>) attributes {dimension_semantics = [#tpu.dimension_semantics<parallel>, #tpu.dimension_semantics<parallel>], iteration_bounds = array<i64: 2, 1>, scalar_prefetch = 0 : i64, scratch_operands = 0 : i64, tpu.core_type = #tpu.core_type<tc>, window_params = [{transform_indices = @transform_0, window_bounds = array<i64: 256, 4>}, {transform_indices = @transform_1, window_bounds = array<i64: 4, 384>}, {transform_indices = @transform_2, window_bounds = array<i64: 1, 384>}, {transform_indices = @transform_3, window_bounds = array<i64: 256, 384>}]} {
    %c0 = arith.constant 0 : index
    %c0_0 = arith.constant 0 : index
    %0 = vector.load %arg2[%c0, %c0_0] : memref<256x4xf32, #tpu.memory_space<vmem>>, vector<256x4xf32>
    %c0_1 = arith.constant 0 : index
    %c0_2 = arith.constant 0 : index
    %1 = vector.load %arg3[%c0_1, %c0_2] : memref<4x384xf32, #tpu.memory_space<vmem>>, vector<4x384xf32>
    %cst = arith.constant dense<0.000000e+00> : vector<256x384xf32>
    %2 = tpu.matmul %0, %1, %cst {dimension_numbers = #tpu.dot_dimension_numbers<[1], [0], [0], [1], [0, 0, 1, 1], [], []>} : vector<256x4xf32>, vector<4x384xf32>, vector<256x384xf32> -> vector<256x384xf32>
    %c0_3 = arith.constant 0 : index
    %c0_4 = arith.constant 0 : index
    %3 = vector.load %arg4[%c0_3, %c0_4] : memref<1x384xf32, #tpu.memory_space<vmem>>, vector<1x384xf32>
    %4 = vector.broadcast %3 : vector<1x384xf32> to vector<256x384xf32>
    %5 = arith.addf %2, %4 : vector<256x384xf32>
    %c0_5 = arith.constant 0 : index
    %c0_6 = arith.constant 0 : index
    %6 = vector.load %arg5[%c0_5, %c0_6] : memref<256x384xf32, #tpu.memory_space<vmem>>, vector<256x384xf32>
    tpu.vector_store %arg5[%c0_5, %c0_6], %5 {strides = array<i32>} : memref<256x384xf32, #tpu.memory_space<vmem>>, vector<256x384xf32>,
    return
  }
  func.func @transform_0(%arg0: i32, %arg1: i32) -> (i32, i32) {
    %c0_i32 = arith.constant 0 : i32
    %c0_i32_0 = arith.constant 0 : i32
    return %arg0, %c0_i32 : i32, i32
  }
  func.func @transform_1(%arg0: i32, %arg1: i32) -> (i32, i32) {
    %c0_i32 = arith.constant 0 : i32
    %c0_i32_0 = arith.constant 0 : i32
    return %c0_i32, %arg1 : i32, i32
  }
  func.func @transform_2(%arg0: i32, %arg1: i32) -> (i32, i32) {
    %c0_i32 = arith.constant 0 : i32
    %c0_i32_0 = arith.constant 0 : i32
    return %c0_i32, %arg1 : i32, i32
  }
  func.func @transform_3(%arg0: i32, %arg1: i32) -> (i32, i32) {
    %c0_i32 = arith.constant 0 : i32
    return %arg0, %arg1 : i32, i32
  }
}

</mosaic_0001>

<llo_original>
// kernel: tpu_custom_call.1
$region0: #{tpu_custom_call.1}
  #allocation0 [shape = 'u32[]', space=smem, size = 0x4, offset = 0x4, fixed_abs, tag = 'smem constant byte address 0x4 - core index']
  #allocation1 [shape = 'u32[144,128]{1,0:T(1,128)}', space=vmem, size = 0x12000, scoped, tag = 'internal scratch']
  %s0 = inlined_call_operand.vmem [shape: f32[512,4], index: 0, kind: input, shape index: {}]
  %s1 = inlined_call_operand.vmem [shape: f32[4,384], index: 1, kind: input, shape index: {}]
  %s2 = inlined_call_operand.vmem [shape: f32[1,384], index: 2, kind: input, shape index: {}]
  %s3 = inlined_call_operand.hbm [shape: f32[512,384], index: 3, kind: output, shape index: {}]
  %s4 = sld [smem:[#allocation0]]
  $region45: #{tpu_custom_call.1} parent=0
    _
  %s6 = ssub.s32 1, %s4
  %s7 = scalar_select 0, %s6, %s4
  $region1: #{tpu_custom_call.1} parent=0
    #allocation2 [shape = 'u8[786432]{0}', space=vmem, size = 0xc0000, scoped, tag = 'output window, operand 0']
    #allocation3 [shape = 's32[2]{0}', space=sflag, size = 0x8, scoped, tag = 'scoped memory for tpu_custom_call.1']
    %8 = vsyncpa [#allocation3], 0
    %s9 = scalar_lea.sflag [#allocation3], 1
    %10 = vsyncpa %s9, 0
    loop: start=0, step=1, limit=4
    $region2: #{tpu_custom_call.1} parent=1 // loop_pre_header
      _
    $region3: #{tpu_custom_call.1} parent=1 // loop_header
      %s12 = sphi 0, %s16
      %p13 = scmp.ge.s32.totalorder %s12, 4
      %s19 = sphi 0, %s31
      %s20 = sphi 0, %s27
      %s21 = sphi 0, %s19
      %s22 = sphi 0, %s20
      %s23 = sphi 0, %s21
      %s24 = sphi 0, %s22
      %s34 = sphi 0, %s36
      %s37 = sphi 0, %s34
      %s38 = sphi 0, %s37
      %s54 = sphi 0, %s38
      %s60 = sphi 0, %s62
      %s63 = sphi 0, %s60
      %s64 = sphi 0, %s63
      %s80 = sphi 0, %s64
      %s86 = sphi 0, %s88
      %s89 = sphi 0, %s86
      %s90 = sphi 0, %s89
      %s106 = sphi 0, %s90
      %s114 = sphi 0, %s116
      %s117 = sphi 0, %s114
      %s118 = sphi 0, %s117
      %s134 = sphi 0, %s118
    $region4: #{tpu_custom_call.1} parent=1 // loop_header_branch
      %15 = sbr.rel (%p13) target = $region8
    $region5: #{tpu_custom_call.1} parent=1 // loop_body
      %s17 = ssub.s32 %s12, 1
      %s18 = ssub.s32 %s12, 2
      %s25 = sadd.s32 1, %s20
      %p26 = scmp.ge.s32.totalorder %s25, 1
      %s27 = scalar_select %p26, 0, %s25
      %s28 = sadd.s32 1, %s19
      %s29 = scalar_select %p26, %s28, %s19
      %p30 = scmp.ge.s32.totalorder %s29, 2
      %s31 = scalar_select %p30, 0, %s29
      %s32 = ssub.s32 %s19, %s31
      %p33 = scmp.eq.s32.totalorder %s32, 0
      %s35 = sadd.s32 %s34, 1
      %s36 = scalar_select %p33, %s34, %s35
      %p39 = pneg %p33
      %p40 = scmp.eq.s32.totalorder %s12, 1
      %p41 = por %p39, %p40
      %p42 = scmp.ne.s32.totalorder %s34, %s37
      %p43 = scmp.eq.s32.totalorder %s12, 0
      %p44 = por %p42, %p43
      %p45 = scmp.ne.s32.totalorder %s34, %s37
      %p46 = scmp.eq.s32.totalorder %s17, 1
      %p47 = por %p45, %p46
      %p48 = scmp.ne.s32.totalorder %s37, %s38
      %p49 = scmp.eq.s32.totalorder %s17, 0
      %p50 = por %p48, %p49
      %p51 = scmp.ne.s32.totalorder %s37, %s38
      %p52 = scmp.eq.s32.totalorder %s18, 1
      %p53 = por %p51, %p52
      %p55 = scmp.ne.s32.totalorder %s38, %s54
      %p56 = scmp.eq.s32.totalorder %s18, 0
      %p57 = por %p55, %p56
      %s58 = ssub.s32 %s20, %s27
      %p59 = scmp.eq.s32.totalorder %s58, 0
      %s61 = sadd.s32 %s60, 1
      %s62 = scalar_select %p59, %s60, %s61
      %p65 = pneg %p59
      %p66 = scmp.eq.s32.totalorder %s12, 1
      %p67 = por %p65, %p66
      %p68 = scmp.ne.s32.totalorder %s60, %s63
      %p69 = scmp.eq.s32.totalorder %s12, 0
      %p70 = por %p68, %p69
      %p71 = scmp.ne.s32.totalorder %s60, %s63
      %p72 = scmp.eq.s32.totalorder %s17, 1
      %p73 = por %p71, %p72
      %p74 = scmp.ne.s32.totalorder %s63, %s64
      %p75 = scmp.eq.s32.totalorder %s17, 0
      %p76 = por %p74, %p75
      %p77 = scmp.ne.s32.totalorder %s63, %s64
      %p78 = scmp.eq.s32.totalorder %s18, 1
      %p79 = por %p77, %p78
      %p81 = scmp.ne.s32.totalorder %s64, %s80
      %p82 = scmp.eq.s32.totalorder %s18, 0
      %p83 = por %p81, %p82
      %s84 = ssub.s32 %s20, %s27
      %p85 = scmp.eq.s32.totalorder %s84, 0
      %s87 = sadd.s32 %s86, 1
      %s88 = scalar_select %p85, %s86, %s87
      %p91 = pneg %p85
      %p92 = scmp.eq.s32.totalorder %s12, 1
      %p93 = por %p91, %p92
      %p94 = scmp.ne.s32.totalorder %s86, %s89
      %p95 = scmp.eq.s32.totalorder %s12, 0
      %p96 = por %p94, %p95
      %p97 = scmp.ne.s32.totalorder %s86, %s89
      %p98 = scmp.eq.s32.totalorder %s17, 1
      %p99 = por %p97, %p98
      %p100 = scmp.ne.s32.totalorder %s89, %s90
      %p101 = scmp.eq.s32.totalorder %s17, 0
      %p102 = por %p100, %p101
      %p103 = scmp.ne.s32.totalorder %s89, %s90
      %p104 = scmp.eq.s32.totalorder %s18, 1
      %p105 = por %p103, %p104
      %p107 = scmp.ne.s32.totalorder %s90, %s106
      %p108 = scmp.eq.s32.totalorder %s18, 0
      %p109 = por %p107, %p108
      %s110 = ssub.s32 %s19, %s31
      %s111 = ssub.s32 %s20, %s27
      %s112 = sor.u32 %s110, %s111
      %p113 = scmp.eq.s32.totalorder %s112, 0
      %s115 = sadd.s32 %s114, 1
      %s116 = scalar_select %p113, %s114, %s115
      %p119 = pneg %p113
      %p120 = scmp.eq.s32.totalorder %s12, 1
      %p121 = por %p119, %p120
      %p122 = scmp.ne.s32.totalorder %s114, %s117
      %p123 = scmp.eq.s32.totalorder %s12, 0
      %p124 = por %p122, %p123
      %p125 = scmp.ne.s32.totalorder %s114, %s117
      %p126 = scmp.eq.s32.totalorder %s17, 1
      %p127 = por %p125, %p126
      %p128 = scmp.ne.s32.totalorder %s117, %s118
      %p129 = scmp.eq.s32.totalorder %s17, 0
      %p130 = por %p128, %p129
      %p131 = scmp.ne.s32.totalorder %s117, %s118
      %p132 = scmp.eq.s32.totalorder %s18, 1
      %p133 = por %p131, %p132
      %p135 = scmp.ne.s32.totalorder %s118, %s134
      %p136 = scmp.eq.s32.totalorder %s18, 0
      %p137 = por %p135, %p136
      %p138 = scmp.le.s32.totalorder 1, %s12
      %p139 = scmp.lt.s32.totalorder %s12, 3
      %p140 = pnand %p138, %p139
      %p141 = pneg %p140
      // Predicated region
      $region9: #{tpu_custom_call.1} parent=5 // pred_check
        _
      $region10: #{tpu_custom_call.1} parent=5 // pred_check_branch
        %143 = sbr.rel (%p140) target = $region12
      $region11: #{tpu_custom_call.1} parent=5 // pred_region
        %s144 = ssub.s32 %s12, 1
        // Predicated region
        $region13: #{tpu_custom_call.1} parent=11 // pred_check
          %p145 = pneg %p76
        $region14: #{tpu_custom_call.1} parent=11 // pred_check_branch
          %147 = sbr.rel (%p145) target = $region16
        $region15: #{tpu_custom_call.1} parent=11 // pred_region
          %s148 = smul.u32 3, %s22
          %p149 = scmp.lt.s32.totalorder %s148, 2
          %s150 = scalar_select %p149, %s148, 2
          %s151 = smul.addr %s150, 4
          %s152 = scalar_lea.vmem %s1, %s151
          %s153 = smul.u32 3, %s22
        $region16: #{tpu_custom_call.1} parent=11 // pred_fallthru
          _
        // Predicated region
        $region17: #{tpu_custom_call.1} parent=11 // pred_check
          %p154 = pneg %p102
        $region18: #{tpu_custom_call.1} parent=11 // pred_check_branch
          %156 = sbr.rel (%p154) target = $region20
        $region19: #{tpu_custom_call.1} parent=11 // pred_region
          %s157 = smul.u32 3, %s22
          %p158 = scmp.lt.s32.totalorder %s157, 2
          %s159 = scalar_select %p158, %s157, 2
          %s160 = scalar_lea.vmem %s2, %s159
          %s161 = smul.u32 3, %s22
        $region20: #{tpu_custom_call.1} parent=11 // pred_fallthru
          _
      $region12: #{tpu_custom_call.1} parent=5 // pred_fallthru
        _
      %p162 = scmp.lt.s32.totalorder %s12, 2
      // Predicated region
      $region21: #{tpu_custom_call.1} parent=5 // pred_check
        %p163 = pneg %p162
      $region22: #{tpu_custom_call.1} parent=5 // pred_check_branch
        %165 = sbr.rel (%p163) target = $region24
      $region23: #{tpu_custom_call.1} parent=5 // pred_region
        // Predicated region
        $region25: #{tpu_custom_call.1} parent=23 // pred_check
          %p166 = pneg %p44
        $region26: #{tpu_custom_call.1} parent=23 // pred_check_branch
          %168 = sbr.rel (%p166) target = $region28
        $region27: #{tpu_custom_call.1} parent=23 // pred_region
          %s169 = smul.u32 32, %s19
          %p170 = scmp.lt.s32.totalorder %s169, 63
          %s171 = scalar_select %p170, %s169, 63
          %s172 = smul.addr %s171, 8
          %s173 = scalar_lea.vmem %s0, %s172
          %s174 = smul.u32 32, %s19
        $region28: #{tpu_custom_call.1} parent=23 // pred_fallthru
          _
      $region24: #{tpu_custom_call.1} parent=5 // pred_fallthru
        _
      %p175 = scmp.le.s32.totalorder 1, %s12
      %p176 = scmp.lt.s32.totalorder %s12, 3
      %p177 = pnand %p175, %p176
      %p178 = pneg %p177
      // Predicated region
      $region29: #{tpu_custom_call.1} parent=5 // pred_check
        _
      $region30: #{tpu_custom_call.1} parent=5 // pred_check_branch
        %180 = sbr.rel (%p177) target = $region32
      $region31: #{tpu_custom_call.1} parent=5 // pred_region
        %s181 = ssub.s32 %s12, 1
        %s182 = smul.u32 32, %s21
        %p183 = scmp.lt.s32.totalorder %s182, 63
        %s184 = scalar_select %p183, %s182, 63
        %s185 = smul.addr %s184, 8
        %s186 = scalar_lea.vmem %s0, %s185
        %p187 = pneg %p50
        %p188 = pneg %p47
        %s189 = smul.u32 3, %s22
        %p190 = scmp.lt.s32.totalorder %s189, 2
        %s191 = scalar_select %p190, %s189, 2
        %s192 = smul.addr %s191, 4
        %s193 = scalar_lea.vmem %s1, %s192
        %p194 = pneg %p76
        %p195 = pneg %p73
        %s196 = smul.u32 3, %s22
        %p197 = scmp.lt.s32.totalorder %s196, 2
        %s198 = scalar_select %p197, %s196, 2
        %s199 = scalar_lea.vmem %s2, %s198
        %p200 = pneg %p102
        %p201 = pneg %p99
        %p202 = pneg %p130
        %p203 = pneg %p127
        %s204 = sand.u32 %s117, 1
        %s205 = scalar_lea.sflag [#allocation3], %s204
        %s206 = sand.u32 %s117, 1
        %s207 = smul.addr %s206, 768
        %s208 = scalar_lea.vmem [#allocation2], %s207
        %s209 = smul.u32 32, %s21
        %p210 = scmp.lt.s32.totalorder %s209, 63
        %s211 = scalar_select %p210, %s209, 63
        %s212 = smul.addr %s211, 8
        %s213 = scalar_lea.vmem %s0, %s212
        %s214 = smul.u32 32, %s21
        %s215 = smul.u32 3, %s22
        %p216 = scmp.lt.s32.totalorder %s215, 2
        %s217 = scalar_select %p216, %s215, 2
        %s218 = smul.addr %s217, 4
        %s219 = scalar_lea.vmem %s1, %s218
        %s220 = smul.u32 3, %s22
        %s221 = smul.u32 3, %s22
        %p222 = scmp.lt.s32.totalorder %s221, 2
        %s223 = scalar_select %p222, %s221, 2
        %s224 = scalar_lea.vmem %s2, %s223
        %s225 = smul.u32 3, %s22
        %s226 = smul.u32 32, %s21
        %s227 = smul.u32 3, %s22
        %v228 = vld [vmem:[%s213] sm:$0xff]
        %v229 = vld [vmem:[%s213 + $0x8] sm:$0xff]
        %v230 = vld [vmem:[%s213 + $0x10] sm:$0xff]
        %v231 = vld [vmem:[%s213 + $0x18] sm:$0xff]
        %v232 = vld [vmem:[%s213 + $0x20] sm:$0xff]
        %v233 = vld [vmem:[%s213 + $0x28] sm:$0xff]
        %v234 = vld [vmem:[%s213 + $0x30] sm:$0xff]
        %v235 = vld [vmem:[%s213 + $0x38] sm:$0xff]
        %v236 = vld [vmem:[%s213 + $0x40] sm:$0xff]
        %v237 = vld [vmem:[%s213 + $0x48] sm:$0xff]
        %v238 = vld [vmem:[%s213 + $0x50] sm:$0xff]
        %v239 = vld [vmem:[%s213 + $0x58] sm:$0xff]
        %v240 = vld [vmem:[%s213 + $0x60] sm:$0xff]
        %v241 = vld [vmem:[%s213 + $0x68] sm:$0xff]
        %v242 = vld [vmem:[%s213 + $0x70] sm:$0xff]
        %v243 = vld [vmem:[%s213 + $0x78] sm:$0xff]
        %v244 = vld [vmem:[%s213 + $0x80] sm:$0xff]
        %v245 = vld [vmem:[%s213 + $0x88] sm:$0xff]
        %v246 = vld [vmem:[%s213 + $0x90] sm:$0xff]
        %v247 = vld [vmem:[%s213 + $0x98] sm:$0xff]
        %v248 = vld [vmem:[%s213 + $0xa0] sm:$0xff]
        %v249 = vld [vmem:[%s213 + $0xa8] sm:$0xff]
        %v250 = vld [vmem:[%s213 + $0xb0] sm:$0xff]
        %v251 = vld [vmem:[%s213 + $0xb8] sm:$0xff]
        %v252 = vld [vmem:[%s213 + $0xc0] sm:$0xff]
        %v253 = vld [vmem:[%s213 + $0xc8] sm:$0xff]
        %v254 = vld [vmem:[%s213 + $0xd0] sm:$0xff]
        %v255 = vld [vmem:[%s213 + $0xd8] sm:$0xff]
        %v256 = vld [vmem:[%s213 + $0xe0] sm:$0xff]
        %v257 = vld [vmem:[%s213 + $0xe8] sm:$0xff]
        %v258 = vld [vmem:[%s213 + $0xf0] sm:$0xff]
        %v259 = vld [vmem:[%s213 + $0xf8] sm:$0xff]
        %v260 = vld [vmem:[%s219] sm:$0xff]
        %v261 = vld [vmem:[%s219 + $0x8] sm:$0xf]
        %v262 = vld [vmem:[%s224] sm:$0x7]
        %v264 = vlaneseq
        %v265 = vshrl.u32 %v264, 7
        %v266 = vsub.s32 0, %v265
        %v267 = vrot.slane %v262, %v266
        %v268 = vlaneseq
        %v269 = vshrl.u32 %v268, 7
        %v270 = vsub.s32 1, %v269
        %v271 = vrot.slane %v262, %v270
        %v272 = vlaneseq
        %v273 = vshrl.u32 %v272, 7
        %v274 = vsub.s32 2, %v273
        %v275 = vrot.slane %v262, %v274
        %v281 = vcombine.high %v260, %v260
        %vm282 = vcmask 31744
        %v284 = vsel %vm282, %v228, 0
        %v287 = vsel %vm282, %v229, 0
        %v290 = vsel %vm282, %v230, 0
        %v293 = vsel %vm282, %v231, 0
        %v296 = vsel %vm282, %v232, 0
        %v299 = vsel %vm282, %v233, 0
        %v302 = vsel %vm282, %v234, 0
        %v305 = vsel %vm282, %v235, 0
        %v308 = vsel %vm282, %v236, 0
        %v311 = vsel %vm282, %v237, 0
        %v314 = vsel %vm282, %v238, 0
        %v317 = vsel %vm282, %v239, 0
        %v320 = vsel %vm282, %v240, 0
        %v323 = vsel %vm282, %v241, 0
        %v326 = vsel %vm282, %v242, 0
        %v329 = vsel %vm282, %v243, 0
        %v332 = vsel %vm282, %v244, 0
        %v335 = vsel %vm282, %v245, 0
        %v338 = vsel %vm282, %v246, 0
        %v341 = vsel %vm282, %v247, 0
        %v344 = vsel %vm282, %v248, 0
        %v347 = vsel %vm282, %v249, 0
        %v350 = vsel %vm282, %v250, 0
        %v353 = vsel %vm282, %v251, 0
        %v356 = vsel %vm282, %v252, 0
        %v359 = vsel %vm282, %v253, 0
        %v362 = vsel %vm282, %v254, 0
        %v365 = vsel %vm282, %v255, 0
        %v368 = vsel %vm282, %v256, 0
        %v371 = vsel %vm282, %v257, 0
        %v374 = vsel %vm282, %v258, 0
        %v377 = vsel %vm282, %v259, 0
        %vm379 = vcmask 1043456
        %v380 = vsel %vm379, %v260, 0
        %v382 = vsel %vm379, %v281, 0
        %v384 = vsel %vm379, %v261, 0
        %386 = vmatprep.subr.mxu0 0.0
        %387 = vmatpush1.msra.mxu0 0.0
        %388 = vmatprep.subr.mxu0 0.0
        %389 = vmatpush1.msra.mxu0 0.0
        %390 = vmatprep.subr.mxu0 0.0
        %391 = vmatpush1.msra.mxu0 0.0
        %392 = vmatprep.subr.mxu0 0.0
        %393 = vmatpush1.msra.mxu0 0.0
        %394 = vmatprep.subr.mxu0 0.0
        %395 = vmatpush1.msra.mxu0 0.0
        %396 = vmatprep.subr.mxu0 0.0
        %397 = vmatpush1.msra.mxu0 0.0
        %398 = vmatprep.subr.mxu0 0.0
        %399 = vmatpush1.msra.mxu0 0.0
        %400 = vmatprep.subr.mxu0 0.0
        %401 = vmatpush1.msra.mxu0 0.0
        %402 = vmatprep.subr.mxu0 0.0
        %403 = vmatpush1.msra.mxu0 0.0
        %404 = vmatprep.subr.mxu0 0.0
        %405 = vmatpush1.msra.mxu0 0.0
        %406 = vmatprep.subr.mxu0 0.0
        %407 = vmatpush1.msra.mxu0 0.0
        %408 = vmatprep.subr.mxu0 0.0
        %409 = vmatpush1.msra.mxu0 0.0
        %410 = vmatprep.subr.mxu0 0.0
        %411 = vmatpush1.msra.mxu0 0.0
        %412 = vmatprep.subr.mxu0 0.0
        %413 = vmatpush1.msra.mxu0 0.0
        %414 = vmatprep.subr.mxu0 0.0
        %415 = vmatpush1.msra.mxu0 0.0
        %416 = vmatprep.subr.mxu0 %v382
        %417 = vmatpush1.msra.mxu0 %v380
        %418 = vmatprep.subr.mxu0 0.0
        %419 = vmatpush2.msra.mxu0 0.0
        %420 = vmatprep.subr.mxu0 0.0
        %421 = vmatpush2.msra.mxu0 0.0
        %422 = vmatprep.subr.mxu0 0.0
        %423 = vmatpush2.msra.mxu0 0.0
        %424 = vmatprep.subr.mxu0 0.0
        %425 = vmatpush2.msra.mxu0 0.0
        %426 = vmatprep.subr.mxu0 0.0
        %427 = vmatpush2.msra.mxu0 0.0
        %428 = vmatprep.subr.mxu0 0.0
        %429 = vmatpush2.msra.mxu0 0.0
        %430 = vmatprep.subr.mxu0 0.0
        %431 = vmatpush2.msra.mxu0 0.0
        %432 = vmatprep.subr.mxu0 0.0
        %433 = vmatpush2.msra.mxu0 0.0
        %434 = vmatprep.subr.mxu0 0.0
        %435 = vmatpush2.msra.mxu0 0.0
        %436 = vmatprep.subr.mxu0 0.0
        %437 = vmatpush2.msra.mxu0 0.0
        %438 = vmatprep.subr.mxu0 0.0
        %439 = vmatpush2.msra.mxu0 0.0
        %440 = vmatprep.subr.mxu0 0.0
        %441 = vmatpush2.msra.mxu0 0.0
        %442 = vmatprep.subr.mxu0 0.0
        %443 = vmatpush2.msra.mxu0 0.0
        %444 = vmatprep.subr.mxu0 0.0
        %445 = vmatpush2.msra.mxu0 0.0
        %446 = vmatprep.subr.mxu0 0.0
        %447 = vmatpush2.msra.mxu0 0.0
        %448 = vmatprep.subr.mxu0 0.0
        %449 = vmatpush2.msra.mxu0 0.0
        %450 = vmatprep.mubr.f32.mxu0 0.0
        %451 = vmatmul.mubr.f32.gmra.mxu0 %v284
        %v452 = vpop.f32.mrf.mxu0
        %v453 = vadd.f32 %v267, %v452
        %v454 = vpop.f32.mrf.mxu0
        %v455 = vadd.f32 %v271, %v454
        %456 = vmatprep.mubr.f32.mxu0 0.0
        %457 = vmatmul.mubr.f32.gmra.mxu0 %v287
        %v458 = vpop.f32.mrf.mxu0
        %v459 = vadd.f32 %v267, %v458
        %v460 = vpop.f32.mrf.mxu0
        %v461 = vadd.f32 %v271, %v460
        %462 = vmatprep.mubr.f32.mxu0 0.0
        %463 = vmatmul.mubr.f32.gmra.mxu0 %v290
        %v464 = vpop.f32.mrf.mxu0
        %v465 = vadd.f32 %v267, %v464
        %v466 = vpop.f32.mrf.mxu0
        %v467 = vadd.f32 %v271, %v466
        %468 = vmatprep.mubr.f32.mxu0 0.0
        %469 = vmatmul.mubr.f32.gmra.mxu0 %v293
        %v470 = vpop.f32.mrf.mxu0
        %v471 = vadd.f32 %v267, %v470
        %v472 = vpop.f32.mrf.mxu0
        %v473 = vadd.f32 %v271, %v472
        %474 = vmatprep.mubr.f32.mxu0 0.0
        %475 = vmatmul.mubr.f32.gmra.mxu0 %v296
        %v476 = vpop.f32.mrf.mxu0
        %v477 = vadd.f32 %v267, %v476
        %v478 = vpop.f32.mrf.mxu0
        %v479 = vadd.f32 %v271, %v478
        %480 = vmatprep.mubr.f32.mxu0 0.0
        %481 = vmatmul.mubr.f32.gmra.mxu0 %v299
        %v482 = vpop.f32.mrf.mxu0
        %v483 = vadd.f32 %v267, %v482
        %v484 = vpop.f32.mrf.mxu0
        %v485 = vadd.f32 %v271, %v484
        %486 = vmatprep.mubr.f32.mxu0 0.0
        %487 = vmatmul.mubr.f32.gmra.mxu0 %v302
        %v488 = vpop.f32.mrf.mxu0
        %v489 = vadd.f32 %v267, %v488
        %v490 = vpop.f32.mrf.mxu0
        %v491 = vadd.f32 %v271, %v490
        %492 = vmatprep.mubr.f32.mxu0 0.0
        %493 = vmatmul.mubr.f32.gmra.mxu0 %v305
        %v494 = vpop.f32.mrf.mxu0
        %v495 = vadd.f32 %v267, %v494
        %v496 = vpop.f32.mrf.mxu0
        %v497 = vadd.f32 %v271, %v496
        %498 = vmatprep.mubr.f32.mxu0 0.0
        %499 = vmatmul.mubr.f32.gmra.mxu0 %v308
        %v500 = vpop.f32.mrf.mxu0
        %v501 = vadd.f32 %v267, %v500
        %v502 = vpop.f32.mrf.mxu0
        %v503 = vadd.f32 %v271, %v502
        %504 = vmatprep.mubr.f32.mxu0 0.0
        %505 = vmatmul.mubr.f32.gmra.mxu0 %v311
        %v506 = vpop.f32.mrf.mxu0
        %v507 = vadd.f32 %v267, %v506
        %v508 = vpop.f32.mrf.mxu0
        %v509 = vadd.f32 %v271, %v508
        %510 = vmatprep.mubr.f32.mxu0 0.0
        %511 = vmatmul.mubr.f32.gmra.mxu0 %v314
        %v512 = vpop.f32.mrf.mxu0
        %v513 = vadd.f32 %v267, %v512
        %v514 = vpop.f32.mrf.mxu0
        %v515 = vadd.f32 %v271, %v514
        %516 = vmatprep.mubr.f32.mxu0 0.0
        %517 = vmatmul.mubr.f32.gmra.mxu0 %v317
        %v518 = vpop.f32.mrf.mxu0
        %v519 = vadd.f32 %v267, %v518
        %v520 = vpop.f32.mrf.mxu0
        %v521 = vadd.f32 %v271, %v520
        %522 = vmatprep.mubr.f32.mxu0 0.0
        %523 = vmatmul.mubr.f32.gmra.mxu0 %v320
        %v524 = vpop.f32.mrf.mxu0
        %v525 = vadd.f32 %v267, %v524
        %v526 = vpop.f32.mrf.mxu0
        %v527 = vadd.f32 %v271, %v526
        %528 = vmatprep.mubr.f32.mxu0 0.0
        %529 = vmatmul.mubr.f32.gmra.mxu0 %v323
        %v530 = vpop.f32.mrf.mxu0
        %v531 = vadd.f32 %v267, %v530
        %v532 = vpop.f32.mrf.mxu0
        %v533 = vadd.f32 %v271, %v532
        %534 = vmatprep.mubr.f32.mxu0 0.0
        %535 = vmatmul.mubr.f32.gmra.mxu0 %v326
        %v536 = vpop.f32.mrf.mxu0
        %v537 = vadd.f32 %v267, %v536
        %v538 = vpop.f32.mrf.mxu0
        %v539 = vadd.f32 %v271, %v538
        %540 = vmatprep.mubr.f32.mxu0 0.0
        %541 = vmatmul.mubr.f32.gmra.mxu0 %v329
        %v542 = vpop.f32.mrf.mxu0
        %v543 = vadd.f32 %v267, %v542
        %v544 = vpop.f32.mrf.mxu0
        %v545 = vadd.f32 %v271, %v544
        %546 = vmatprep.mubr.f32.mxu0 0.0
        %547 = vmatmul.mubr.f32.gmra.mxu0 %v332
        %v548 = vpop.f32.mrf.mxu0
        %v549 = vadd.f32 %v267, %v548
        %v550 = vpop.f32.mrf.mxu0
        %v551 = vadd.f32 %v271, %v550
        %552 = vmatprep.mubr.f32.mxu0 0.0
        %553 = vmatmul.mubr.f32.gmra.mxu0 %v335
        %v554 = vpop.f32.mrf.mxu0
        %v555 = vadd.f32 %v267, %v554
        %v556 = vpop.f32.mrf.mxu0
        %v557 = vadd.f32 %v271, %v556
        %558 = vmatprep.mubr.f32.mxu0 0.0
        %559 = vmatmul.mubr.f32.gmra.mxu0 %v338
        %v560 = vpop.f32.mrf.mxu0
        %v561 = vadd.f32 %v267, %v560
        %v562 = vpop.f32.mrf.mxu0
        %v563 = vadd.f32 %v271, %v562
        %564 = vmatprep.mubr.f32.mxu0 0.0
        %565 = vmatmul.mubr.f32.gmra.mxu0 %v341
        %v566 = vpop.f32.mrf.mxu0
        %v567 = vadd.f32 %v267, %v566
        %v568 = vpop.f32.mrf.mxu0
        %v569 = vadd.f32 %v271, %v568
        %570 = vmatprep.mubr.f32.mxu0 0.0
        %571 = vmatmul.mubr.f32.gmra.mxu0 %v344
        %v572 = vpop.f32.mrf.mxu0
        %v573 = vadd.f32 %v267, %v572
        %v574 = vpop.f32.mrf.mxu0
        %v575 = vadd.f32 %v271, %v574
        %576 = vmatprep.mubr.f32.mxu0 0.0
        %577 = vmatmul.mubr.f32.gmra.mxu0 %v347
        %v578 = vpop.f32.mrf.mxu0
        %v579 = vadd.f32 %v267, %v578
        %v580 = vpop.f32.mrf.mxu0
        %v581 = vadd.f32 %v271, %v580
        %582 = vmatprep.mubr.f32.mxu0 0.0
        %583 = vmatmul.mubr.f32.gmra.mxu0 %v350
        %v584 = vpop.f32.mrf.mxu0
        %v585 = vadd.f32 %v267, %v584
        %v586 = vpop.f32.mrf.mxu0
        %v587 = vadd.f32 %v271, %v586
        %588 = vmatprep.mubr.f32.mxu0 0.0
        %589 = vmatmul.mubr.f32.gmra.mxu0 %v353
        %v590 = vpop.f32.mrf.mxu0
        %v591 = vadd.f32 %v267, %v590
        %v592 = vpop.f32.mrf.mxu0
        %v593 = vadd.f32 %v271, %v592
        %594 = vmatprep.mubr.f32.mxu0 0.0
        %595 = vmatmul.mubr.f32.gmra.mxu0 %v356
        %v596 = vpop.f32.mrf.mxu0
        %v597 = vadd.f32 %v267, %v596
        %v598 = vpop.f32.mrf.mxu0
        %v599 = vadd.f32 %v271, %v598
        %600 = vmatprep.mubr.f32.mxu0 0.0
        %601 = vmatmul.mubr.f32.gmra.mxu0 %v359
        %v602 = vpop.f32.mrf.mxu0
        %v603 = vadd.f32 %v267, %v602
        %v604 = vpop.f32.mrf.mxu0
        %v605 = vadd.f32 %v271, %v604
        %606 = vmatprep.mubr.f32.mxu0 0.0
        %607 = vmatmul.mubr.f32.gmra.mxu0 %v362
        %v608 = vpop.f32.mrf.mxu0
        %v609 = vadd.f32 %v267, %v608
        %v610 = vpop.f32.mrf.mxu0
        %v611 = vadd.f32 %v271, %v610
        %612 = vmatprep.mubr.f32.mxu0 0.0
        %613 = vmatmul.mubr.f32.gmra.mxu0 %v365
        %v614 = vpop.f32.mrf.mxu0
        %v615 = vadd.f32 %v267, %v614
        %v616 = vpop.f32.mrf.mxu0
        %v617 = vadd.f32 %v271, %v616
        %618 = vmatprep.mubr.f32.mxu0 0.0
        %619 = vmatmul.mubr.f32.gmra.mxu0 %v368
        %v620 = vpop.f32.mrf.mxu0
        %v621 = vadd.f32 %v267, %v620
        %v622 = vpop.f32.mrf.mxu0
        %v623 = vadd.f32 %v271, %v622
        %624 = vmatprep.mubr.f32.mxu0 0.0
        %625 = vmatmul.mubr.f32.gmra.mxu0 %v371
        %v626 = vpop.f32.mrf.mxu0
        %v627 = vadd.f32 %v267, %v626
        %v628 = vpop.f32.mrf.mxu0
        %v629 = vadd.f32 %v271, %v628
        %630 = vmatprep.mubr.f32.mxu0 0.0
        %631 = vmatmul.mubr.f32.gmra.mxu0 %v374
        %v632 = vpop.f32.mrf.mxu0
        %v633 = vadd.f32 %v267, %v632
        %v634 = vpop.f32.mrf.mxu0
        %v635 = vadd.f32 %v271, %v634
        %636 = vmatprep.mubr.f32.mxu0 0.0
        %637 = vmatmul.mubr.f32.gmra.mxu0 %v377
        %v638 = vpop.f32.mrf.mxu0
        %v639 = vadd.f32 %v267, %v638
        %v640 = vpop.f32.mrf.mxu0
        %v641 = vadd.f32 %v271, %v640
        %642 = vdwg.mxu0
        %643 = vmatprep.subr.mxu0 0.0
        %644 = vmatpush1.msra.mxu0 0.0
        %645 = vmatprep.subr.mxu0 0.0
        %646 = vmatpush1.msra.mxu0 0.0
        %647 = vmatprep.subr.mxu0 0.0
        %648 = vmatpush1.msra.mxu0 0.0
        %649 = vmatprep.subr.mxu0 0.0
        %650 = vmatpush1.msra.mxu0 0.0
        %651 = vmatprep.subr.mxu0 0.0
        %652 = vmatpush1.msra.mxu0 0.0
        %653 = vmatprep.subr.mxu0 0.0
        %654 = vmatpush1.msra.mxu0 0.0
        %655 = vmatprep.subr.mxu0 0.0
        %656 = vmatpush1.msra.mxu0 0.0
        %657 = vmatprep.subr.mxu0 0.0
        %658 = vmatpush1.msra.mxu0 0.0
        %659 = vmatprep.subr.mxu0 0.0
        %660 = vmatpush1.msra.mxu0 0.0
        %661 = vmatprep.subr.mxu0 0.0
        %662 = vmatpush1.msra.mxu0 0.0
        %663 = vmatprep.subr.mxu0 0.0
        %664 = vmatpush1.msra.mxu0 0.0
        %665 = vmatprep.subr.mxu0 0.0
        %666 = vmatpush1.msra.mxu0 0.0
        %667 = vmatprep.subr.mxu0 0.0
        %668 = vmatpush1.msra.mxu0 0.0
        %669 = vmatprep.subr.mxu0 0.0
        %670 = vmatpush1.msra.mxu0 0.0
        %671 = vmatprep.subr.mxu0 0.0
        %672 = vmatpush1.msra.mxu0 0.0
        %673 = vmatprep.subr.mxu0 0.0
        %674 = vmatpush1.msra.mxu0 %v384
        %675 = vmatprep.subr.mxu0 0.0
        %676 = vmatpush2.msra.mxu0 0.0
        %677 = vmatprep.subr.mxu0 0.0
        %678 = vmatpush2.msra.mxu0 0.0
        %679 = vmatprep.subr.mxu0 0.0
        %680 = vmatpush2.msra.mxu0 0.0
        %681 = vmatprep.subr.mxu0 0.0
        %682 = vmatpush2.msra.mxu0 0.0
        %683 = vmatprep.subr.mxu0 0.0
        %684 = vmatpush2.msra.mxu0 0.0
        %685 = vmatprep.subr.mxu0 0.0
        %686 = vmatpush2.msra.mxu0 0.0
        %687 = vmatprep.subr.mxu0 0.0
        %688 = vmatpush2.msra.mxu0 0.0
        %689 = vmatprep.subr.mxu0 0.0
        %690 = vmatpush2.msra.mxu0 0.0
        %691 = vmatprep.subr.mxu0 0.0
        %692 = vmatpush2.msra.mxu0 0.0
        %693 = vmatprep.subr.mxu0 0.0
        %694 = vmatpush2.msra.mxu0 0.0
        %695 = vmatprep.subr.mxu0 0.0
        %696 = vmatpush2.msra.mxu0 0.0
        %697 = vmatprep.subr.mxu0 0.0
        %698 = vmatpush2.msra.mxu0 0.0
        %699 = vmatprep.subr.mxu0 0.0
        %700 = vmatpush2.msra.mxu0 0.0
        %701 = vmatprep.subr.mxu0 0.0
        %702 = vmatpush2.msra.mxu0 0.0
        %703 = vmatprep.subr.mxu0 0.0
        %704 = vmatpush2.msra.mxu0 0.0
        %705 = vmatprep.subr.mxu0 0.0
        %706 = vmatpush2.msra.mxu0 0.0
        %707 = vmatprep.mubr.f32.mxu0 0.0
        %708 = vmatmul.mubr.f32.gmra.mxu0 %v284
        %v709 = vpop.f32.mrf.mxu0
        %v710 = vadd.f32 %v275, %v709
        %v711 = vpop.f32.mrf.mxu0
        %712 = vmatprep.mubr.f32.mxu0 0.0
        %713 = vmatmul.mubr.f32.gmra.mxu0 %v287
        %v714 = vpop.f32.mrf.mxu0
        %v715 = vadd.f32 %v275, %v714
        %v716 = vpop.f32.mrf.mxu0
        %717 = vmatprep.mubr.f32.mxu0 0.0
        %718 = vmatmul.mubr.f32.gmra.mxu0 %v290
        %v719 = vpop.f32.mrf.mxu0
        %v720 = vadd.f32 %v275, %v719
        %v721 = vpop.f32.mrf.mxu0
        %722 = vmatprep.mubr.f32.mxu0 0.0
        %723 = vmatmul.mubr.f32.gmra.mxu0 %v293
        %v724 = vpop.f32.mrf.mxu0
        %v725 = vadd.f32 %v275, %v724
        %v726 = vpop.f32.mrf.mxu0
        %727 = vmatprep.mubr.f32.mxu0 0.0
        %728 = vmatmul.mubr.f32.gmra.mxu0 %v296
        %v729 = vpop.f32.mrf.mxu0
        %v730 = vadd.f32 %v275, %v729
        %v731 = vpop.f32.mrf.mxu0
        %732 = vmatprep.mubr.f32.mxu0 0.0
        %733 = vmatmul.mubr.f32.gmra.mxu0 %v299
        %v734 = vpop.f32.mrf.mxu0
        %v735 = vadd.f32 %v275, %v734
        %v736 = vpop.f32.mrf.mxu0
        %737 = vmatprep.mubr.f32.mxu0 0.0
        %738 = vmatmul.mubr.f32.gmra.mxu0 %v302
        %v739 = vpop.f32.mrf.mxu0
        %v740 = vadd.f32 %v275, %v739
        %v741 = vpop.f32.mrf.mxu0
        %742 = vmatprep.mubr.f32.mxu0 0.0
        %743 = vmatmul.mubr.f32.gmra.mxu0 %v305
        %v744 = vpop.f32.mrf.mxu0
        %v745 = vadd.f32 %v275, %v744
        %v746 = vpop.f32.mrf.mxu0
        %747 = vmatprep.mubr.f32.mxu0 0.0
        %748 = vmatmul.mubr.f32.gmra.mxu0 %v308
        %v749 = vpop.f32.mrf.mxu0
        %v750 = vadd.f32 %v275, %v749
        %v751 = vpop.f32.mrf.mxu0
        %752 = vmatprep.mubr.f32.mxu0 0.0
        %753 = vmatmul.mubr.f32.gmra.mxu0 %v311
        %v754 = vpop.f32.mrf.mxu0
        %v755 = vadd.f32 %v275, %v754
        %v756 = vpop.f32.mrf.mxu0
        %757 = vmatprep.mubr.f32.mxu0 0.0
        %758 = vmatmul.mubr.f32.gmra.mxu0 %v314
        %v759 = vpop.f32.mrf.mxu0
        %v760 = vadd.f32 %v275, %v759
        %v761 = vpop.f32.mrf.mxu0
        %762 = vmatprep.mubr.f32.mxu0 0.0
        %763 = vmatmul.mubr.f32.gmra.mxu0 %v317
        %v764 = vpop.f32.mrf.mxu0
        %v765 = vadd.f32 %v275, %v764
        %v766 = vpop.f32.mrf.mxu0
        %767 = vmatprep.mubr.f32.mxu0 0.0
        %768 = vmatmul.mubr.f32.gmra.mxu0 %v320
        %v769 = vpop.f32.mrf.mxu0
        %v770 = vadd.f32 %v275, %v769
        %v771 = vpop.f32.mrf.mxu0
        %772 = vmatprep.mubr.f32.mxu0 0.0
        %773 = vmatmul.mubr.f32.gmra.mxu0 %v323
        %v774 = vpop.f32.mrf.mxu0
        %v775 = vadd.f32 %v275, %v774
        %v776 = vpop.f32.mrf.mxu0
        %777 = vmatprep.mubr.f32.mxu0 0.0
        %778 = vmatmul.mubr.f32.gmra.mxu0 %v326
        %v779 = vpop.f32.mrf.mxu0
        %v780 = vadd.f32 %v275, %v779
        %v781 = vpop.f32.mrf.mxu0
        %782 = vmatprep.mubr.f32.mxu0 0.0
        %783 = vmatmul.mubr.f32.gmra.mxu0 %v329
        %v784 = vpop.f32.mrf.mxu0
        %v785 = vadd.f32 %v275, %v784
        %v786 = vpop.f32.mrf.mxu0
        %787 = vmatprep.mubr.f32.mxu0 0.0
        %788 = vmatmul.mubr.f32.gmra.mxu0 %v332
        %v789 = vpop.f32.mrf.mxu0
        %v790 = vadd.f32 %v275, %v789
        %v791 = vpop.f32.mrf.mxu0
        %792 = vmatprep.mubr.f32.mxu0 0.0
        %793 = vmatmul.mubr.f32.gmra.mxu0 %v335
        %v794 = vpop.f32.mrf.mxu0
        %v795 = vadd.f32 %v275, %v794
        %v796 = vpop.f32.mrf.mxu0
        %797 = vmatprep.mubr.f32.mxu0 0.0
        %798 = vmatmul.mubr.f32.gmra.mxu0 %v338
        %v799 = vpop.f32.mrf.mxu0
        %v800 = vadd.f32 %v275, %v799
        %v801 = vpop.f32.mrf.mxu0
        %802 = vmatprep.mubr.f32.mxu0 0.0
        %803 = vmatmul.mubr.f32.gmra.mxu0 %v341
        %v804 = vpop.f32.mrf.mxu0
        %v805 = vadd.f32 %v275, %v804
        %v806 = vpop.f32.mrf.mxu0
        %807 = vmatprep.mubr.f32.mxu0 0.0
        %808 = vmatmul.mubr.f32.gmra.mxu0 %v344
        %v809 = vpop.f32.mrf.mxu0
        %v810 = vadd.f32 %v275, %v809
        %v811 = vpop.f32.mrf.mxu0
        %812 = vmatprep.mubr.f32.mxu0 0.0
        %813 = vmatmul.mubr.f32.gmra.mxu0 %v347
        %v814 = vpop.f32.mrf.mxu0
        %v815 = vadd.f32 %v275, %v814
        %v816 = vpop.f32.mrf.mxu0
        %817 = vmatprep.mubr.f32.mxu0 0.0
        %818 = vmatmul.mubr.f32.gmra.mxu0 %v350
        %v819 = vpop.f32.mrf.mxu0
        %v820 = vadd.f32 %v275, %v819
        %v821 = vpop.f32.mrf.mxu0
        %822 = vmatprep.mubr.f32.mxu0 0.0
        %823 = vmatmul.mubr.f32.gmra.mxu0 %v353
        %v824 = vpop.f32.mrf.mxu0
        %v825 = vadd.f32 %v275, %v824
        %v826 = vpop.f32.mrf.mxu0
        %827 = vmatprep.mubr.f32.mxu0 0.0
        %828 = vmatmul.mubr.f32.gmra.mxu0 %v356
        %v829 = vpop.f32.mrf.mxu0
        %v830 = vadd.f32 %v275, %v829
        %v831 = vpop.f32.mrf.mxu0
        %832 = vmatprep.mubr.f32.mxu0 0.0
        %833 = vmatmul.mubr.f32.gmra.mxu0 %v359
        %v834 = vpop.f32.mrf.mxu0
        %v835 = vadd.f32 %v275, %v834
        %v836 = vpop.f32.mrf.mxu0
        %837 = vmatprep.mubr.f32.mxu0 0.0
        %838 = vmatmul.mubr.f32.gmra.mxu0 %v362
        %v839 = vpop.f32.mrf.mxu0
        %v840 = vadd.f32 %v275, %v839
        %v841 = vpop.f32.mrf.mxu0
        %842 = vmatprep.mubr.f32.mxu0 0.0
        %843 = vmatmul.mubr.f32.gmra.mxu0 %v365
        %v844 = vpop.f32.mrf.mxu0
        %v845 = vadd.f32 %v275, %v844
        %v846 = vpop.f32.mrf.mxu0
        %847 = vmatprep.mubr.f32.mxu0 0.0
        %848 = vmatmul.mubr.f32.gmra.mxu0 %v368
        %v849 = vpop.f32.mrf.mxu0
        %v850 = vadd.f32 %v275, %v849
        %v851 = vpop.f32.mrf.mxu0
        %852 = vmatprep.mubr.f32.mxu0 0.0
        %853 = vmatmul.mubr.f32.gmra.mxu0 %v371
        %v854 = vpop.f32.mrf.mxu0
        %v855 = vadd.f32 %v275, %v854
        %v856 = vpop.f32.mrf.mxu0
        %857 = vmatprep.mubr.f32.mxu0 0.0
        %858 = vmatmul.mubr.f32.gmra.mxu0 %v374
        %v859 = vpop.f32.mrf.mxu0
        %v860 = vadd.f32 %v275, %v859
        %v861 = vpop.f32.mrf.mxu0
        %862 = vmatprep.mubr.f32.mxu0 0.0
        %863 = vmatmul.mubr.f32.gmra.mxu0 %v377
        %v864 = vpop.f32.mrf.mxu0
        %v865 = vadd.f32 %v275, %v864
        %v866 = vpop.f32.mrf.mxu0
        %867 = vdwg.mxu0
        %868 = vst [vmem:[%s208] sm:$0xff] %v453
        %869 = vst [vmem:[%s208 + $0x8] sm:$0xff] %v455
        %870 = vst [vmem:[%s208 + $0x10] sm:$0xff] %v710
        %871 = vst [vmem:[%s208 + $0x18] sm:$0xff] %v459
        %872 = vst [vmem:[%s208 + $0x20] sm:$0xff] %v461
        %873 = vst [vmem:[%s208 + $0x28] sm:$0xff] %v715
        %874 = vst [vmem:[%s208 + $0x30] sm:$0xff] %v465
        %875 = vst [vmem:[%s208 + $0x38] sm:$0xff] %v467
        %876 = vst [vmem:[%s208 + $0x40] sm:$0xff] %v720
        %877 = vst [vmem:[%s208 + $0x48] sm:$0xff] %v471
        %878 = vst [vmem:[%s208 + $0x50] sm:$0xff] %v473
        %879 = vst [vmem:[%s208 + $0x58] sm:$0xff] %v725
        %880 = vst [vmem:[%s208 + $0x60] sm:$0xff] %v477
        %881 = vst [vmem:[%s208 + $0x68] sm:$0xff] %v479
        %882 = vst [vmem:[%s208 + $0x70] sm:$0xff] %v730
        %883 = vst [vmem:[%s208 + $0x78] sm:$0xff] %v483
        %884 = vst [vmem:[%s208 + $0x80] sm:$0xff] %v485
        %885 = vst [vmem:[%s208 + $0x88] sm:$0xff] %v735
        %886 = vst [vmem:[%s208 + $0x90] sm:$0xff] %v489
        %887 = vst [vmem:[%s208 + $0x98] sm:$0xff] %v491
        %888 = vst [vmem:[%s208 + $0xa0] sm:$0xff] %v740
        %889 = vst [vmem:[%s208 + $0xa8] sm:$0xff] %v495
        %890 = vst [vmem:[%s208 + $0xb0] sm:$0xff] %v497
        %891 = vst [vmem:[%s208 + $0xb8] sm:$0xff] %v745
        %892 = vst [vmem:[%s208 + $0xc0] sm:$0xff] %v501
        %893 = vst [vmem:[%s208 + $0xc8] sm:$0xff] %v503
        %894 = vst [vmem:[%s208 + $0xd0] sm:$0xff] %v750
        %895 = vst [vmem:[%s208 + $0xd8] sm:$0xff] %v507
        %896 = vst [vmem:[%s208 + $0xe0] sm:$0xff] %v509
        %897 = vst [vmem:[%s208 + $0xe8] sm:$0xff] %v755
        %898 = vst [vmem:[%s208 + $0xf0] sm:$0xff] %v513
        %899 = vst [vmem:[%s208 + $0xf8] sm:$0xff] %v515
        %900 = vst [vmem:[%s208 + $0x100] sm:$0xff] %v760
        %901 = vst [vmem:[%s208 + $0x108] sm:$0xff] %v519
        %902 = vst [vmem:[%s208 + $0x110] sm:$0xff] %v521
        %903 = vst [vmem:[%s208 + $0x118] sm:$0xff] %v765
        %904 = vst [vmem:[%s208 + $0x120] sm:$0xff] %v525
        %905 = vst [vmem:[%s208 + $0x128] sm:$0xff] %v527
        %906 = vst [vmem:[%s208 + $0x130] sm:$0xff] %v770
        %907 = vst [vmem:[%s208 + $0x138] sm:$0xff] %v531
        %908 = vst [vmem:[%s208 + $0x140] sm:$0xff] %v533
        %909 = vst [vmem:[%s208 + $0x148] sm:$0xff] %v775
        %910 = vst [vmem:[%s208 + $0x150] sm:$0xff] %v537
        %911 = vst [vmem:[%s208 + $0x158] sm:$0xff] %v539
        %912 = vst [vmem:[%s208 + $0x160] sm:$0xff] %v780
        %913 = vst [vmem:[%s208 + $0x168] sm:$0xff] %v543
        %914 = vst [vmem:[%s208 + $0x170] sm:$0xff] %v545
        %915 = vst [vmem:[%s208 + $0x178] sm:$0xff] %v785
        %916 = vst [vmem:[%s208 + $0x180] sm:$0xff] %v549
        %917 = vst [vmem:[%s208 + $0x188] sm:$0xff] %v551
        %918 = vst [vmem:[%s208 + $0x190] sm:$0xff] %v790
        %919 = vst [vmem:[%s208 + $0x198] sm:$0xff] %v555
        %920 = vst [vmem:[%s208 + $0x1a0] sm:$0xff] %v557
        %921 = vst [vmem:[%s208 + $0x1a8] sm:$0xff] %v795
        %922 = vst [vmem:[%s208 + $0x1b0] sm:$0xff] %v561
        %923 = vst [vmem:[%s208 + $0x1b8] sm:$0xff] %v563
        %924 = vst [vmem:[%s208 + $0x1c0] sm:$0xff] %v800
        %925 = vst [vmem:[%s208 + $0x1c8] sm:$0xff] %v567
        %926 = vst [vmem:[%s208 + $0x1d0] sm:$0xff] %v569
        %927 = vst [vmem:[%s208 + $0x1d8] sm:$0xff] %v805
        %928 = vst [vmem:[%s208 + $0x1e0] sm:$0xff] %v573
        %929 = vst [vmem:[%s208 + $0x1e8] sm:$0xff] %v575
        %930 = vst [vmem:[%s208 + $0x1f0] sm:$0xff] %v810
        %931 = vst [vmem:[%s208 + $0x1f8] sm:$0xff] %v579
        %932 = vst [vmem:[%s208 + $0x200] sm:$0xff] %v581
        %933 = vst [vmem:[%s208 + $0x208] sm:$0xff] %v815
        %934 = vst [vmem:[%s208 + $0x210] sm:$0xff] %v585
        %935 = vst [vmem:[%s208 + $0x218] sm:$0xff] %v587
        %936 = vst [vmem:[%s208 + $0x220] sm:$0xff] %v820
        %937 = vst [vmem:[%s208 + $0x228] sm:$0xff] %v591
        %938 = vst [vmem:[%s208 + $0x230] sm:$0xff] %v593
        %939 = vst [vmem:[%s208 + $0x238] sm:$0xff] %v825
        %940 = vst [vmem:[%s208 + $0x240] sm:$0xff] %v597
        %941 = vst [vmem:[%s208 + $0x248] sm:$0xff] %v599
        %942 = vst [vmem:[%s208 + $0x250] sm:$0xff] %v830
        %943 = vst [vmem:[%s208 + $0x258] sm:$0xff] %v603
        %944 = vst [vmem:[%s208 + $0x260] sm:$0xff] %v605
        %945 = vst [vmem:[%s208 + $0x268] sm:$0xff] %v835
        %946 = vst [vmem:[%s208 + $0x270] sm:$0xff] %v609
        %947 = vst [vmem:[%s208 + $0x278] sm:$0xff] %v611
        %948 = vst [vmem:[%s208 + $0x280] sm:$0xff] %v840
        %949 = vst [vmem:[%s208 + $0x288] sm:$0xff] %v615
        %950 = vst [vmem:[%s208 + $0x290] sm:$0xff] %v617
        %951 = vst [vmem:[%s208 + $0x298] sm:$0xff] %v845
        %952 = vst [vmem:[%s208 + $0x2a0] sm:$0xff] %v621
        %953 = vst [vmem:[%s208 + $0x2a8] sm:$0xff] %v623
        %954 = vst [vmem:[%s208 + $0x2b0] sm:$0xff] %v850
        %955 = vst [vmem:[%s208 + $0x2b8] sm:$0xff] %v627
        %956 = vst [vmem:[%s208 + $0x2c0] sm:$0xff] %v629
        %957 = vst [vmem:[%s208 + $0x2c8] sm:$0xff] %v855
        %958 = vst [vmem:[%s208 + $0x2d0] sm:$0xff] %v633
        %959 = vst [vmem:[%s208 + $0x2d8] sm:$0xff] %v635
        %960 = vst [vmem:[%s208 + $0x2e0] sm:$0xff] %v860
        %961 = vst [vmem:[%s208 + $0x2e8] sm:$0xff] %v639
        %962 = vst [vmem:[%s208 + $0x2f0] sm:$0xff] %v641
        %963 = vst [vmem:[%s208 + $0x2f8] sm:$0xff] %v865
        %s964 = sand.u32 %s117, 1
        %s965 = scalar_lea.sflag [#allocation3], %s964
        %s966 = sand.u32 %s117, 1
        %s967 = smul.addr %s966, 768
        %s968 = scalar_lea.vmem [#allocation2], %s967
        // Predicated region
        $region33: #{tpu_custom_call.1} parent=31 // pred_check
          %p969 = pneg %p127
        $region34: #{tpu_custom_call.1} parent=31 // pred_check_branch
          %971 = sbr.rel (%p969) target = $region36
        $region35: #{tpu_custom_call.1} parent=31 // pred_region
          %s972 = smul.u32 32, %s21
          %s973 = smul.u32 3, %s22
          %s975 = ssub.s32 12288, 12288
          %976 = vsyncadd %s965, %s975
          %s977 = smul.addr %s972, 3
          %s978 = sadd.s32 %s973, %s977
          %s979 = smul.addr %s978, 128
          %s980 = scalar_lea.hbm %s3, %s979
          %s981 = sshll.u32 %s968, 4
          %s982 = int_to_ptr.vmem [resolvable:$true] %s981
          %987 = dma.vmem_to_hbm [thread:$0]  %s982, 12288, %s980, %s965, 384, 384, 24
        $region36: #{tpu_custom_call.1} parent=31 // pred_fallthru
          _
      $region32: #{tpu_custom_call.1} parent=5 // pred_fallthru
        _
      %p988 = scmp.le.s32.totalorder 2, %s12
      // Predicated region
      $region37: #{tpu_custom_call.1} parent=5 // pred_check
        %p989 = pneg %p988
      $region38: #{tpu_custom_call.1} parent=5 // pred_check_branch
        %991 = sbr.rel (%p989) target = $region40
      $region39: #{tpu_custom_call.1} parent=5 // pred_region
        %s992 = ssub.s32 %s12, 2
        // Predicated region
        $region41: #{tpu_custom_call.1} parent=39 // pred_check
          %p993 = pneg %p133
        $region42: #{tpu_custom_call.1} parent=39 // pred_check_branch
          %995 = sbr.rel (%p993) target = $region44
        $region43: #{tpu_custom_call.1} parent=39 // pred_region
          %s996 = sand.u32 %s118, 1
          %s997 = scalar_lea.sflag [#allocation3], %s996
          %s998 = sand.u32 %s118, 1
          %s999 = smul.addr %s998, 768
          %s1000 = scalar_lea.vmem [#allocation2], %s999
          %1001 = dma.done %s997, 12288
        $region44: #{tpu_custom_call.1} parent=39 // pred_fallthru
          _
      $region40: #{tpu_custom_call.1} parent=5 // pred_fallthru
        _
    $region6: #{tpu_custom_call.1} parent=1 // loop_footer
      %s16 = sadd.s32 1, %s12
    $region7: #{tpu_custom_call.1} parent=1 // loop_footer_branch
      %11 = sbr.rel target = $region3
    $region8: #{tpu_custom_call.1} parent=1 // loop_exit
      _
    %1002 = vsyncpa [#allocation3], 1
    %s1003 = scalar_lea.sflag [#allocation3], 1
    %1004 = vsyncpa %s1003, 1

</llo_original>
